<compile_context>
chip_gen: v6e
topology: v6e:2x2x1
jax: 0.10.0
libtpu: 0.0.40
codegen_flags: <defaults>
</compile_context>

<pallas_src>
import functools

import jax
import jax.numpy as jnp
from jax.experimental import pallas as pl
from jax.experimental.pallas import tpu as pltpu


def _simam_kernel(x_ref, o_ref, *, inv_hw, inv_n, e_lambda, approx_recip):
    """One row tile: each row is the full spatial map of one (b, c) slice.

    x_ref: (TM, HW) in the input dtype; o_ref: (TM, HW) in the same dtype.
    """
    # Cast in-kernel, BEFORE the reductions (bf16 accumulation would lose
    # precision for large H*W).
    x = x_ref[...].astype(jnp.float32)                   # (TM, HW)
    mu = jnp.sum(x, axis=-1, keepdims=True) * inv_hw      # (TM, 1) per-row mean
    d = x - mu
    d2 = d * d                                             # (x - mu)^2, exact
    s = jnp.sum(d2, axis=-1, keepdims=True)                # per-row sum of squares
    # NOTE: a fused sum(x)/sum(x^2) single pass (s = sumsq - hw*mu^2) would
    # shorten the reduce->elementwise->reduce chain slightly, but risks
    # cancellation for near-constant maps; kept exact on purpose (minor win).
    denom = s * inv_n + e_lambda                           # (TM, 1)
    if approx_recip:
        coef = 0.25 * pl.reciprocal(denom, approx=True)    # per-row recip on EUP
    else:
        coef = 0.25 / denom                                # still per-row only
    y = d2 * coef + 0.5                                    # broadcast mul-add, no per-elem divide
    o_ref[...] = (x * jax.nn.sigmoid(y)).astype(o_ref.dtype)


def _round_down(v, m):
    return (v // m) * m


def simam_forward(x, e_lambda=1e-4, vmem_block_bytes=2 * 1024 * 1024,
                  approx_recip=True):
    """SIMAM forward. x: (B, C, H, W) NCHW, any float dtype. Returns same shape/dtype."""
    B, C, H, W = x.shape
    hw = H * W
    rows = B * C
    n = max(hw - 1, 1)                                     # guard H = W = 1

    dtype = x.dtype
    itemsize = jnp.dtype(dtype).itemsize
    # Contiguous view only (no transpose, no dtype cast): each row = one (b, c) map.
    x2d = x.reshape(rows, hw)

    # Sublane alignment by dtype packing (f32 -> 8, bf16/f16 -> 16, 8-bit -> 32).
    align = {4: 8, 2: 16, 1: 32}.get(itemsize, 8)

    # Largest aligned row tile within the per-block VMEM budget.
    tm = max(align, _round_down(vmem_block_bytes // max(hw * itemsize, 1), align))
    # Never larger than the (aligned-up) row count.
    tm = min(tm, max(align, -(-rows // align) * align))
    # Keep >= 2 grid tiles when the problem allows it so v7x's two TensorCores
    # both get work on the "parallel" axis (no-op on single-TC v5e/v6e).
    half = _round_down(rows // 2, align)
    if half >= align:
        tm = min(tm, half)

    num_tiles = pl.cdiv(rows, tm)

    # TODO(synk): for hw < 128 (late-stage 7x7 / 14x14 maps) a lane-packed layout
    # (several maps per 128-lane row + segmented reduce) would avoid masked vst.
    # TODO(synk): for extremely large maps where even an 8-row block exceeds the
    # VMEM budget, a two-pass split-hw reduction would be needed; not hit here.

    kernel = functools.partial(
        _simam_kernel,
        inv_hw=1.0 / float(hw),
        inv_n=1.0 / float(n),
        e_lambda=float(e_lambda),
        approx_recip=approx_recip,
    )

    out2d = pl.pallas_call(
        kernel,
        out_shape=jax.ShapeDtypeStruct((rows, hw), dtype),
        grid=(num_tiles,),
        in_specs=[pl.BlockSpec((tm, hw), lambda i: (i, 0))],
        out_specs=pl.BlockSpec((tm, hw), lambda i: (i, 0)),
        compiler_params=pltpu.CompilerParams(
            dimension_semantics=("parallel",),
            vmem_limit_bytes=32 * 1024 * 1024,
        ),
        cost_estimate=pl.CostEstimate(
            flops=10 * rows * hw,
            transcendentals=rows * hw,
            bytes_accessed=2 * rows * hw * itemsize,
        ),
    )(x2d)

    return out2d.reshape(B, C, H, W)


def _reference(x, e_lambda=1e-4):
    """Pure-JAX reference matching the PyTorch SIMAM module."""
    B, C, H, W = x.shape
    n = W * H - 1
    mu = jnp.mean(x, axis=(2, 3), keepdims=True)
    d2 = (x - mu) ** 2
    y = d2 / (4.0 * (jnp.sum(d2, axis=(2, 3), keepdims=True) / n + e_lambda)) + 0.5
    return x * jax.nn.sigmoid(y)


if __name__ == "__main__":
    # Module config: SIMAM(e_lambda=1e-4) on a small NCHW tensor.
    B, C, H, W = 2, 4, 16, 16
    e_lambda = 1e-4

    key = jax.random.PRNGKey(0)
    x = jax.random.normal(key, (B, C, H, W), dtype=jnp.float32)

    # f32 path.
    out = jax.block_until_ready(simam_forward(x, e_lambda=e_lambda))
    ref = _reference(x, e_lambda=e_lambda)
    assert out.shape == (B, C, H, W) and out.dtype == x.dtype, (out.shape, out.dtype)
    # Tolerance leaves room for the EUP approximate per-row reciprocal.
    assert jnp.allclose(out, ref, atol=5e-3, rtol=5e-3), float(jnp.max(jnp.abs(out - ref)))

    # bf16 path (exercises the in-kernel cast: bf16 in/out, f32 reductions).
    x_bf = x.astype(jnp.bfloat16)
    out_bf = jax.block_until_ready(simam_forward(x_bf, e_lambda=e_lambda))
    assert out_bf.dtype == jnp.bfloat16
    assert jnp.allclose(out_bf.astype(jnp.float32), ref, atol=5e-2, rtol=5e-2), float(
        jnp.max(jnp.abs(out_bf.astype(jnp.float32) - ref))
    )

    print("KERNEL_OK")
</pallas_src>

<mosaic_0001>
module attributes {stable_mosaic.version = 11 : i64} {
  func.func @_simam_kernel(%arg0: i32, %arg1: memref<8x256xf32, #tpu.memory_space<vmem>>, %arg2: memref<8x256xf32, #tpu.memory_space<vmem>>) attributes {dimension_semantics = [#tpu.dimension_semantics<parallel>], iteration_bounds = array<i64: 1>, scalar_prefetch = 0 : i64, scratch_operands = 0 : i64, tpu.core_type = #tpu.core_type<tc>, window_params = [{transform_indices = @transform_0, window_bounds = array<i64: 8, 256>}, {transform_indices = @transform_1, window_bounds = array<i64: 8, 256>}]} {
    %c0 = arith.constant 0 : index
    %c0_0 = arith.constant 0 : index
    %0 = vector.load %arg1[%c0, %c0_0] : memref<8x256xf32, #tpu.memory_space<vmem>>, vector<8x256xf32>
    %cst = arith.constant dense<0.000000e+00> : vector<8xf32>
    %1 = vector.multi_reduction <add>, %0, %cst [1] : vector<8x256xf32> to vector<8xf32>
    %2 = vector.shape_cast %1 : vector<8xf32> to vector<8x1xf32>
    %cst_1 = arith.constant 3.906250e-03 : f32
    %3 = vector.broadcast %cst_1 : f32 to vector<8x1xf32>
    %4 = arith.mulf %2, %3 : vector<8x1xf32>
    %5 = vector.broadcast %4 : vector<8x1xf32> to vector<8x256xf32>
    %6 = arith.subf %0, %5 : vector<8x256xf32>
    %7 = arith.mulf %6, %6 : vector<8x256xf32>
    %cst_2 = arith.constant dense<0.000000e+00> : vector<8xf32>
    %8 = vector.multi_reduction <add>, %7, %cst_2 [1] : vector<8x256xf32> to vector<8xf32>
    %9 = vector.shape_cast %8 : vector<8xf32> to vector<8x1xf32>
    %cst_3 = arith.constant 0.00392156886 : f32
    %10 = vector.broadcast %cst_3 : f32 to vector<8x1xf32>
    %11 = arith.mulf %9, %10 : vector<8x1xf32>
    %cst_4 = arith.constant 9.99999974E-5 : f32
    %12 = vector.broadcast %cst_4 : f32 to vector<8x1xf32>
    %13 = arith.addf %11, %12 : vector<8x1xf32>
    %14 = tpu.reciprocal %13 {approx = true} : vector<8x1xf32> -> vector<8x1xf32>
    %cst_5 = arith.constant 2.500000e-01 : f32
    %15 = vector.broadcast %cst_5 : f32 to vector<8x1xf32>
    %16 = arith.mulf %15, %14 : vector<8x1xf32>
    %17 = vector.broadcast %16 : vector<8x1xf32> to vector<8x256xf32>
    %18 = arith.mulf %7, %17 : vector<8x256xf32>
    %cst_6 = arith.constant 5.000000e-01 : f32
    %19 = vector.broadcast %cst_6 : f32 to vector<8x256xf32>
    %20 = arith.addf %18, %19 : vector<8x256xf32>
    %21 = arith.negf %20 : vector<8x256xf32>
    %22 = math.exp %21 : vector<8x256xf32>
    %cst_7 = arith.constant 1.000000e+00 : f32
    %23 = vector.broadcast %cst_7 : f32 to vector<8x256xf32>
    %24 = arith.addf %23, %22 : vector<8x256xf32>
    %25 = arith.divf %23, %24 : vector<8x256xf32>
    %26 = arith.mulf %0, %25 : vector<8x256xf32>
    %c0_8 = arith.constant 0 : index
    %c0_9 = arith.constant 0 : index
    %27 = vector.load %arg2[%c0_8, %c0_9] : memref<8x256xf32, #tpu.memory_space<vmem>>, vector<8x256xf32>
    tpu.vector_store %arg2[%c0_8, %c0_9], %26 {strides = array<i32>} : memref<8x256xf32, #tpu.memory_space<vmem>>, vector<8x256xf32>,
    return
  }
  func.func @transform_0(%arg0: i32) -> (i32, i32) {
    %c0_i32 = arith.constant 0 : i32
    %c0_i32_0 = arith.constant 0 : i32
    return %arg0, %c0_i32 : i32, i32
  }
  func.func @transform_1(%arg0: i32) -> (i32, i32) {
    %c0_i32 = arith.constant 0 : i32
    %c0_i32_0 = arith.constant 0 : i32
    return %arg0, %c0_i32 : i32, i32
  }
}

</mosaic_0001>

<llo_original>
// kernel: tpu_custom_call.1
$region0: #{tpu_custom_call.1}
  #allocation0 [shape = 'u32[]', space=smem, size = 0x4, offset = 0x4, fixed_abs, tag = 'smem constant byte address 0x4 - core index']
  #allocation1 [shape = 'u32[144,128]{1,0:T(1,128)}', space=vmem, size = 0x12000, scoped, tag = 'internal scratch']
  %s0 = inlined_call_operand.hbm [shape: f32[8,256], index: 0, kind: input, shape index: {}]
  %s1 = inlined_call_operand.hbm [shape: f32[8,256], index: 1, kind: output, shape index: {}]
  %s2 = sld [smem:[#allocation0]]
  $region18: #{tpu_custom_call.1} parent=0
    _
  %s4 = ssub.s32 1, %s2
  %s5 = scalar_select 0, %s4, %s2
  $region1: #{tpu_custom_call.1} parent=0
    #allocation2 [shape = 'u8[8192]{0}', space=vmem, size = 0x2000, scoped, tag = 'input window, operand 0, single buffered']
    #allocation3 [shape = 's32[1]{0}', space=sflag, size = 0x4, scoped, tag = 'scoped memory for tpu_custom_call.1']
    #allocation4 [shape = 's32[1]{0}', space=sflag, size = 0x4, scoped, tag = 'scoped memory for tpu_custom_call.1']
    #allocation5 [shape = 'u8[8192]{0}', space=vmem, size = 0x2000, scoped, tag = 'output window, operand 0, single buffered']
    %6 = vsyncpa [#allocation3], 0
    %7 = vsyncpa [#allocation4], 0
    // Predicated region
    $region2: #{tpu_custom_call.1} parent=1 // pred_check
      _
    $region3: #{tpu_custom_call.1} parent=1 // pred_check_branch
      %9 = sbr.rel (0) target = $region5
    $region4: #{tpu_custom_call.1} parent=1 // pred_region
      %s11 = ssub.s32 256, 256
      %12 = vsyncadd [#allocation3], %s11
      %s14 = sshll.u32 [#allocation2], 4
      %s15 = int_to_ptr.vmem [resolvable:$true] %s14
      %17 = dma.hbm_to_vmem [thread:$0]  %s0, 256, %s15, [#allocation3]
    $region5: #{tpu_custom_call.1} parent=1 // pred_fallthru
      _
    // Predicated region
    $region6: #{tpu_custom_call.1} parent=1 // pred_check
      _
    $region7: #{tpu_custom_call.1} parent=1 // pred_check_branch
      %19 = sbr.rel (0) target = $region9
    $region8: #{tpu_custom_call.1} parent=1 // pred_region
      %20 = dma.done [#allocation3], 256
    $region9: #{tpu_custom_call.1} parent=1 // pred_fallthru
      _
    %v21 = vld [vmem:[#allocation2] sm:$0xff]
    %v22 = vld [vmem:[#allocation2 + $0x8] sm:$0xff]
    %v23 = vadd.f32 %v21, %v22
    %24 = vadd.xlane.f32.xlu0 %v23
    %v25 = vpop.xlane.xlu0 %24
    %v26 = vmul.f32 %v25, 0.00390625
    %v27 = vsub.f32 %v21, %v26
    %v28 = vsub.f32 %v22, %v26
    %v29 = vmul.f32 %v27, %v27
    %v30 = vmul.f32 %v28, %v28
    %v31 = vadd.f32 %v29, %v30
    %32 = vadd.xlane.f32.xlu0 %v31
    %v33 = vpop.xlane.xlu0 %32
    %v34 = vmul.f32 %v33, 0.003921569
    %v35 = vadd.f32 %v34, 0.0001
    %v36 = vrcp.pop %v35
    %v37 = vmul.f32 %v36, 0.25
    %v38 = vmul.f32 %v29, %v37
    %v39 = vmul.f32 %v30, %v37
    %v40 = vadd.f32 %v38, 0.5
    %v41 = vadd.f32 %v39, 0.5
    %v42 = vxor.u32 %v40, 2147483648
    %v43 = vxor.u32 %v41, 2147483648
    %v44 = vmul.f32 %v42, 1.442695
    %v45 = vpow.pop %v44
    %v46 = vmul.f32 %v43, 1.442695
    %v47 = vpow.pop %v46
    %v48 = vadd.f32 %v45, 1.0
    %v49 = vadd.f32 %v47, 1.0
    %v50 = vrcp.pop %v48
    %v51 = vmul.f32 1.0, %v50
    %v52 = vrcp.pop %v49
    %v53 = vmul.f32 1.0, %v52
    %v54 = vmul.f32 %v21, %v51
    %v55 = vmul.f32 %v22, %v53
    %56 = vst [vmem:[#allocation5] sm:$0xff] %v54
    %57 = vst [vmem:[#allocation5 + $0x8] sm:$0xff] %v55
    // Predicated region
    $region10: #{tpu_custom_call.1} parent=1 // pred_check
      _
    $region11: #{tpu_custom_call.1} parent=1 // pred_check_branch
      %59 = sbr.rel (0) target = $region13
    $region12: #{tpu_custom_call.1} parent=1 // pred_region
      %s61 = ssub.s32 256, 256
      %62 = vsyncadd [#allocation4], %s61
      %s64 = sshll.u32 [#allocation5], 4
      %s65 = int_to_ptr.vmem [resolvable:$true] %s64
      %67 = dma.vmem_to_hbm [thread:$0]  %s65, 256, %s1, [#allocation4]
    $region13: #{tpu_custom_call.1} parent=1 // pred_fallthru
      _
    // Predicated region
    $region14: #{tpu_custom_call.1} parent=1 // pred_check
      _
    $region15: #{tpu_custom_call.1} parent=1 // pred_check_branch
      %69 = sbr.rel (0) target = $region17
    $region16: #{tpu_custom_call.1} parent=1 // pred_region
      %70 = dma.done [#allocation4], 256
    $region17: #{tpu_custom_call.1} parent=1 // pred_fallthru
      _
    %71 = vsyncpa [#allocation3], 1
    %72 = vsyncpa [#allocation4], 1

</llo_original>
